<compile_context>
chip_gen: v7x
topology: tpu7x:2x2x1
jax: 0.10.0
libtpu: 0.0.40
codegen_flags: <defaults>
</compile_context>

<pallas_src>
import jax
import jax.numpy as jnp
from jax.experimental import pallas as pl
from jax.experimental.pallas import tpu as pltpu

LANE = 128   # TPU lane width; narrow feature dims are zero-padded up to this
H1 = 128     # fc1 output width (already lane-aligned)
H2 = 64      # fc2 output width (padded to LANE inside the packed params)


def dqn_kernel(x_ref, w1_ref, w23_ref, b_ref, o_ref):
    # One batch tile per grid step.  Weights/biases have constant index_maps so
    # they stay resident in VMEM across steps; only x / out tiles stream.
    x = x_ref[...].astype(jnp.bfloat16)                              # (TB, in) bf16 (cast on VPU)
    h1 = jnp.dot(x, w1_ref[...], preferred_element_type=jnp.float32)
    h1 = jnp.maximum(h1 + b_ref[0:1, :], 0.0)                        # f32 epilogue
    h2 = jnp.dot(h1.astype(jnp.bfloat16), w23_ref[0],
                 preferred_element_type=jnp.float32)
    h2 = jnp.maximum(h2 + b_ref[1:2, :], 0.0)
    out = jnp.dot(h2.astype(jnp.bfloat16), w23_ref[1],
                  preferred_element_type=jnp.float32)
    out = out + b_ref[2:3, :]
    # Narrow store: only the first out_dim lanes are meaningful (rest of the
    # padded fc3 columns are exactly zero-weighted anyway).
    o_ref[...] = out[:, :o_ref.shape[-1]].astype(o_ref.dtype)


def pack_params(params):
    """Pad narrow dims to 128 lanes, cast weights to bf16, pack operands."""
    w1, b1, w2, b2, w3, b3 = params
    out_dim = w3.shape[1]
    # Zero-pad hidden2 (64) and out_dim up to LANE; pad regions are exactly zero
    # so ReLU / the narrow output slice stay exact.
    w2p = jnp.zeros((H1, LANE), jnp.float32).at[:, :H2].set(w2)
    w3p = jnp.zeros((LANE, LANE), jnp.float32).at[:H2, :out_dim].set(w3)
    b1p = b1.reshape(-1)
    b2p = jnp.zeros((LANE,), jnp.float32).at[:H2].set(b2.reshape(-1))
    b3p = jnp.zeros((LANE,), jnp.float32).at[:out_dim].set(b3.reshape(-1))

    w1_bf = w1.astype(jnp.bfloat16)                        # (in_dim, 128)
    w23_bf = jnp.stack([w2p, w3p]).astype(jnp.bfloat16)    # (2, 128, 128)
    b_all = jnp.stack([b1p, b2p, b3p])                     # (3, 128) f32
    return w1_bf, w23_bf, b_all, out_dim


def _choose_tb(B, tb):
    """Pick a batch tile: large enough to amortize per-step overhead, but
    >= 2 grid steps for mid/large batches so v7x's two TensorCores both work."""
    if B <= 256:
        return B                                   # single whole-batch tile
    half = ((B + 1) // 2 + 7) // 8 * 8             # ~B/2, multiple of 8 (sublane)
    return min(tb, max(256, half))


def dqn_forward(x, packed, *, tb=2048):
    w1_bf, w23_bf, b_all, out_dim = packed
    B, in_dim = x.shape
    orig_dtype = x.dtype

    TB = _choose_tb(B, tb)
    grid = pl.cdiv(B, TB)   # ragged last tile handled by Pallas (OOB writes clipped)

    # VMEM @ TB=2048: x 2x128 KiB + out 2x1 MiB (lane-padded buffer) + ~130 KiB
    # weights x2 + a few MiB of f32 intermediates -- well under the 16 MiB (v5e)
    # / 32 MiB (v6e, v7x) scoped defaults.
    flops = 2 * B * (in_dim * H1 + H1 * H2 + H2 * out_dim)
    bytes_accessed = (B * in_dim * 4 + w1_bf.size * 2 + w23_bf.size * 2
                      + b_all.size * 4 + B * out_dim * 4)

    out = pl.pallas_call(
        dqn_kernel,
        out_shape=jax.ShapeDtypeStruct((B, out_dim), jnp.float32),
        grid=(grid,),
        in_specs=[
            pl.BlockSpec((TB, in_dim), lambda i: (i, 0)),        # streamed
            pl.BlockSpec((in_dim, H1), lambda i: (0, 0)),        # resident
            pl.BlockSpec((2, LANE, LANE), lambda i: (0, 0, 0)),  # resident
            pl.BlockSpec((3, LANE), lambda i: (0, 0)),           # resident
        ],
        out_specs=pl.BlockSpec((TB, out_dim), lambda i: (i, 0)),  # narrow output
        compiler_params=pltpu.CompilerParams(
            dimension_semantics=("parallel",)),
        cost_estimate=pl.CostEstimate(
            flops=flops, transcendentals=0, bytes_accessed=bytes_accessed),
    )(x, w1_bf, w23_bf, b_all)

    if out.dtype != orig_dtype:
        out = out.astype(orig_dtype)
    return out


def init_params(key, input_dim, output_dim):
    # Deterministic synthetic init (roughly matches nn.Linear's fan-in uniform).
    # Weights stored as (in_features, out_features), biases as (1, out_features).
    ks = jax.random.split(key, 6)

    def lin(kw, kb, fan_in, fan_out):
        bound = 1.0 / jnp.sqrt(fan_in)
        w = jax.random.uniform(kw, (fan_in, fan_out), jnp.float32, -bound, bound)
        b = jax.random.uniform(kb, (1, fan_out), jnp.float32, -bound, bound)
        return w, b

    w1, b1 = lin(ks[0], ks[1], input_dim, H1)
    w2, b2 = lin(ks[2], ks[3], H1, H2)
    w3, b3 = lin(ks[4], ks[5], H2, output_dim)
    return (w1, b1, w2, b2, w3, b3)


def dqn_reference(x, params):
    # Mirrors the kernel numerics: bf16 MXU operands, f32 accumulate, f32 epilogue.
    w1, b1, w2, b2, w3, b3 = params
    bf = jnp.bfloat16
    h1 = jnp.maximum(jnp.dot(x.astype(bf), w1.astype(bf),
                             preferred_element_type=jnp.float32) + b1, 0.0)
    h2 = jnp.maximum(jnp.dot(h1.astype(bf), w2.astype(bf),
                             preferred_element_type=jnp.float32) + b2, 0.0)
    return jnp.dot(h2.astype(bf), w3.astype(bf),
                   preferred_element_type=jnp.float32) + b3


if __name__ == "__main__":
    key = jax.random.PRNGKey(0)
    k_x, k_p = jax.random.split(key)

    batch, input_dim, output_dim = 8, 16, 4
    x = jax.random.normal(k_x, (batch, input_dim), jnp.float32)
    params = init_params(k_p, input_dim, output_dim)
    packed = pack_params(params)

    out = dqn_forward(x, packed)
    out = jax.block_until_ready(out)

    ref = dqn_reference(x, params)
    assert out.shape == (batch, output_dim)
    assert jnp.allclose(out, ref, atol=1e-2, rtol=1e-2), "mismatch vs reference"
    print("KERNEL_OK")
</pallas_src>

<mosaic_0001>
module attributes {stable_mosaic.version = 11 : i64} {
  func.func @dqn_kernel(%arg0: i32, %arg1: memref<8x16xf32, #tpu.memory_space<vmem>>, %arg2: memref<16x128xbf16, #tpu.memory_space<vmem>>, %arg3: memref<2x128x128xbf16, #tpu.memory_space<vmem>>, %arg4: memref<3x128xf32, #tpu.memory_space<vmem>>, %arg5: memref<8x4xf32, #tpu.memory_space<vmem>>) attributes {dimension_semantics = [#tpu.dimension_semantics<parallel>], iteration_bounds = array<i64: 1>, scalar_prefetch = 0 : i64, scratch_operands = 0 : i64, tpu.core_type = #tpu.core_type<tc>, window_params = [{transform_indices = @transform_0, window_bounds = array<i64: 8, 16>}, {pipeline_mode = #tpu.pipeline_mode<synchronous>, transform_indices = @transform_1, window_bounds = array<i64: 16, 128>}, {pipeline_mode = #tpu.pipeline_mode<synchronous>, transform_indices = @transform_2, window_bounds = array<i64: 2, 128, 128>}, {pipeline_mode = #tpu.pipeline_mode<synchronous>, transform_indices = @transform_3, window_bounds = array<i64: 3, 128>}, {transform_indices = @transform_4, window_bounds = array<i64: 8, 4>}]} {
    %c0 = arith.constant 0 : index
    %c0_0 = arith.constant 0 : index
    %0 = vector.load %arg1[%c0, %c0_0] : memref<8x16xf32, #tpu.memory_space<vmem>>, vector<8x16xf32>
    %1 = arith.truncf %0 : vector<8x16xf32> to vector<8x16xbf16>
    %c0_1 = arith.constant 0 : index
    %c0_2 = arith.constant 0 : index
    %2 = vector.load %arg2[%c0_1, %c0_2] : memref<16x128xbf16, #tpu.memory_space<vmem>>, vector<16x128xbf16>
    %cst = arith.constant dense<0.000000e+00> : vector<8x128xf32>
    %3 = tpu.matmul %1, %2, %cst {dimension_numbers = #tpu.dot_dimension_numbers<[1], [0], [0], [1], [0, 0, 1, 1], [], []>} : vector<8x16xbf16>, vector<16x128xbf16>, vector<8x128xf32> -> vector<8x128xf32>
    %c0_3 = arith.constant 0 : index
    %c0_4 = arith.constant 0 : index
    %4 = vector.load %arg4[%c0_3, %c0_4] : memref<3x128xf32, #tpu.memory_space<vmem>>, vector<1x128xf32>
    %5 = vector.broadcast %4 : vector<1x128xf32> to vector<8x128xf32>
    %6 = arith.addf %3, %5 : vector<8x128xf32>
    %cst_5 = arith.constant 0.000000e+00 : f32
    %7 = vector.broadcast %cst_5 : f32 to vector<8x128xf32>
    %8 = arith.maximumf %6, %7 : vector<8x128xf32>
    %9 = arith.truncf %8 : vector<8x128xf32> to vector<8x128xbf16>
    %c0_6 = arith.constant 0 : index
    %c0_7 = arith.constant 0 : index
    %c0_8 = arith.constant 0 : index
    %10 = vector.load %arg3[%c0_6, %c0_7, %c0_8] : memref<2x128x128xbf16, #tpu.memory_space<vmem>>, vector<1x128x128xbf16>
    %11 = vector.shape_cast %10 : vector<1x128x128xbf16> to vector<128x128xbf16>
    %cst_9 = arith.constant dense<0.000000e+00> : vector<8x128xf32>
    %12 = tpu.matmul %9, %11, %cst_9 {dimension_numbers = #tpu.dot_dimension_numbers<[1], [0], [0], [1], [0, 0, 1, 1], [], []>} : vector<8x128xbf16>, vector<128x128xbf16>, vector<8x128xf32> -> vector<8x128xf32>
    %c1 = arith.constant 1 : index
    %c0_10 = arith.constant 0 : index
    %13 = vector.load %arg4[%c1, %c0_10] : memref<3x128xf32, #tpu.memory_space<vmem>>, vector<1x128xf32>
    %14 = vector.broadcast %13 : vector<1x128xf32> to vector<8x128xf32>
    %15 = arith.addf %12, %14 : vector<8x128xf32>
    %cst_11 = arith.constant 0.000000e+00 : f32
    %16 = vector.broadcast %cst_11 : f32 to vector<8x128xf32>
    %17 = arith.maximumf %15, %16 : vector<8x128xf32>
    %18 = arith.truncf %17 : vector<8x128xf32> to vector<8x128xbf16>
    %c1_12 = arith.constant 1 : index
    %c0_13 = arith.constant 0 : index
    %c0_14 = arith.constant 0 : index
    %19 = vector.load %arg3[%c1_12, %c0_13, %c0_14] : memref<2x128x128xbf16, #tpu.memory_space<vmem>>, vector<1x128x128xbf16>
    %20 = vector.shape_cast %19 : vector<1x128x128xbf16> to vector<128x128xbf16>
    %cst_15 = arith.constant dense<0.000000e+00> : vector<8x128xf32>
    %21 = tpu.matmul %18, %20, %cst_15 {dimension_numbers = #tpu.dot_dimension_numbers<[1], [0], [0], [1], [0, 0, 1, 1], [], []>} : vector<8x128xbf16>, vector<128x128xbf16>, vector<8x128xf32> -> vector<8x128xf32>
    %c2 = arith.constant 2 : index
    %c0_16 = arith.constant 0 : index
    %22 = vector.load %arg4[%c2, %c0_16] : memref<3x128xf32, #tpu.memory_space<vmem>>, vector<1x128xf32>
    %23 = vector.broadcast %22 : vector<1x128xf32> to vector<8x128xf32>
    %24 = arith.addf %21, %23 : vector<8x128xf32>
    %25 = vector.extract_strided_slice %24 {offsets = [0, 0], sizes = [8, 4], strides = [1, 1]} : vector<8x128xf32> to vector<8x4xf32>
    %c0_17 = arith.constant 0 : index
    %c0_18 = arith.constant 0 : index
    %26 = vector.load %arg5[%c0_17, %c0_18] : memref<8x4xf32, #tpu.memory_space<vmem>>, vector<8x4xf32>
    tpu.vector_store %arg5[%c0_17, %c0_18], %25 {strides = array<i32>} : memref<8x4xf32, #tpu.memory_space<vmem>>, vector<8x4xf32>,
    return
  }
  func.func @transform_0(%arg0: i32) -> (i32, i32) {
    %c0_i32 = arith.constant 0 : i32
    %c0_i32_0 = arith.constant 0 : i32
    return %arg0, %c0_i32 : i32, i32
  }
  func.func @transform_1(%arg0: i32) -> (i32, i32) {
    %c0_i32 = arith.constant 0 : i32
    %c0_i32_0 = arith.constant 0 : i32
    %c0_i32_1 = arith.constant 0 : i32
    return %c0_i32, %c0_i32_0 : i32, i32
  }
  func.func @transform_2(%arg0: i32) -> (i32, i32, i32) {
    %c0_i32 = arith.constant 0 : i32
    %c0_i32_0 = arith.constant 0 : i32
    %c0_i32_1 = arith.constant 0 : i32
    %c0_i32_2 = arith.constant 0 : i32
    return %c0_i32, %c0_i32_0, %c0_i32_1 : i32, i32, i32
  }
  func.func @transform_3(%arg0: i32) -> (i32, i32) {
    %c0_i32 = arith.constant 0 : i32
    %c0_i32_0 = arith.constant 0 : i32
    %c0_i32_1 = arith.constant 0 : i32
    return %c0_i32, %c0_i32_0 : i32, i32
  }
  func.func @transform_4(%arg0: i32) -> (i32, i32) {
    %c0_i32 = arith.constant 0 : i32
    %c0_i32_0 = arith.constant 0 : i32
    return %arg0, %c0_i32 : i32, i32
  }
}

</mosaic_0001>

<llo_original>
// kernel: tpu_custom_call.1
$region0: #{tpu_custom_call.1}
  #allocation0 [shape = 'u32[]', space=smem, size = 0x4, offset = 0x4, fixed_abs, tag = 'smem constant byte address 0x4 - core index']
  #allocation1 [shape = 'u32[144,128]{1,0:T(1,128)}', space=vmem, size = 0x12000, scoped, tag = 'internal scratch']
  %s0 = inlined_call_operand.hbm [shape: f32[8,16], index: 0, kind: input, shape index: {}]
  %s1 = inlined_call_operand.hbm [shape: bf16[16,128], index: 1, kind: input, shape index: {}]
  %s2 = inlined_call_operand.hbm [shape: bf16[2,128,128], index: 2, kind: input, shape index: {}]
  %s3 = inlined_call_operand.vmem [shape: f32[3,128], index: 3, kind: input, shape index: {}]
  %s4 = inlined_call_operand.vmem [shape: f32[8,4], index: 4, kind: output, shape index: {}]
  %s5 = sld [smem:[#allocation0]]
  $region38: #{tpu_custom_call.1} parent=0
    _
  %s7 = ssub.s32 1, %s5
  %s8 = scalar_select 0, %s7, %s5
  $region1: #{tpu_custom_call.1} parent=0
    #allocation2 [shape = 'u8[4096]{0}', space=vmem, size = 0x1000, scoped, tag = 'input window, operand 0, single buffered']
    #allocation3 [shape = 's32[1]{0}', space=sflag, size = 0x4, scoped, tag = 'scoped memory for tpu_custom_call.1']
    #allocation4 [shape = 'u8[4096]{0}', space=vmem, size = 0x1000, scoped, tag = 'input window, operand 1, single buffered']
    #allocation5 [shape = 's32[1]{0}', space=sflag, size = 0x4, scoped, tag = 'scoped memory for tpu_custom_call.1']
    #allocation6 [shape = 'u8[65536]{0}', space=vmem, size = 0x10000, scoped, tag = 'input window, operand 2, single buffered']
    %9 = vsyncpa [#allocation3], 0
    %10 = vsyncpa [#allocation5], 0
    // Predicated region
    $region2: #{tpu_custom_call.1} parent=1 // pred_check
      _
    $region3: #{tpu_custom_call.1} parent=1 // pred_check_branch
      %12 = sbr.rel (0) target = $region5
    $region4: #{tpu_custom_call.1} parent=1 // pred_region
      %s14 = ssub.s32 128, 128
      %15 = vsyncadd [#allocation3], %s14
      %s17 = sshll.u32 [#allocation2], 4
      %s18 = int_to_ptr.vmem [resolvable:$true] %s17
      %20 = dma.hbm_to_vmem [thread:$0]  %s0, 128, %s18, [#allocation3]
    $region5: #{tpu_custom_call.1} parent=1 // pred_fallthru
      _
    // Predicated region
    $region6: #{tpu_custom_call.1} parent=1 // pred_check
      _
    $region7: #{tpu_custom_call.1} parent=1 // pred_check_branch
      %22 = sbr.rel (0) target = $region9
    $region8: #{tpu_custom_call.1} parent=1 // pred_region
      %s24 = ssub.s32 128, 128
      %25 = vsyncadd [#allocation5], %s24
      %s26 = sshll.u32 [#allocation4], 4
      %s27 = int_to_ptr.vmem [resolvable:$true] %s26
      %32 = dma.hbm_to_vmem [thread:$0]  %s1, 128, %s27, [#allocation5], 64, 64, 4
    $region9: #{tpu_custom_call.1} parent=1 // pred_fallthru
      _
    // Predicated region
    $region10: #{tpu_custom_call.1} parent=1 // pred_check
      _
    $region11: #{tpu_custom_call.1} parent=1 // pred_check_branch
      %34 = sbr.rel (0) target = $region13
    $region12: #{tpu_custom_call.1} parent=1 // pred_region
      %s36 = ssub.s32 2048, 2048
      %37 = vsyncadd [#allocation5], %s36
      %s38 = sshll.u32 [#allocation6], 4
      %s39 = int_to_ptr.vmem [resolvable:$true] %s38
      %44 = dma.hbm_to_vmem [thread:$0]  %s2, 2048, %s39, [#allocation5], 64, 64, 4
    $region13: #{tpu_custom_call.1} parent=1 // pred_fallthru
      _
    // Predicated region
    $region14: #{tpu_custom_call.1} parent=1 // pred_check
      _
    $region15: #{tpu_custom_call.1} parent=1 // pred_check_branch
      %46 = sbr.rel (0) target = $region17
    $region16: #{tpu_custom_call.1} parent=1 // pred_region
      _
    $region17: #{tpu_custom_call.1} parent=1 // pred_fallthru
      _
    // Predicated region
    $region18: #{tpu_custom_call.1} parent=1 // pred_check
      _
    $region19: #{tpu_custom_call.1} parent=1 // pred_check_branch
      %48 = sbr.rel (0) target = $region21
    $region20: #{tpu_custom_call.1} parent=1 // pred_region
      %49 = dma.done [#allocation3], 128
    $region21: #{tpu_custom_call.1} parent=1 // pred_fallthru
      _
    // Predicated region
    $region22: #{tpu_custom_call.1} parent=1 // pred_check
      _
    $region23: #{tpu_custom_call.1} parent=1 // pred_check_branch
      %51 = sbr.rel (0) target = $region25
    $region24: #{tpu_custom_call.1} parent=1 // pred_region
      %52 = dma.done [#allocation5], 128
    $region25: #{tpu_custom_call.1} parent=1 // pred_fallthru
      _
    // Predicated region
    $region26: #{tpu_custom_call.1} parent=1 // pred_check
      _
    $region27: #{tpu_custom_call.1} parent=1 // pred_check_branch
      %54 = sbr.rel (0) target = $region29
    $region28: #{tpu_custom_call.1} parent=1 // pred_region
      %55 = dma.done [#allocation5], 2048
    $region29: #{tpu_custom_call.1} parent=1 // pred_fallthru
      _
    %v57 = vld [vmem:[#allocation2] sm:$0xff]
    %v58 = vpack.c.bf16 %v57, %v57
    %v59 = vld [vmem:[#allocation4] sm:$0xf]
    %v60 = vld [vmem:[#allocation4 + $0x4] sm:$0xf]
    %v61 = vld [vmem:[%s3] sm:$0x1]
    %v62 = vlaneseq
    %v63 = vshrl.u32 %v62, 7
    %v64 = vsub.s32 0, %v63
    %v65 = vrot.slane %v61, %v64
    %v68 = vunpack.c.l.b16 %v59
    %v69 = vunpack.c.l.b16 %v60
    %v70 = vpack.c.b16 %v69, %v68
    %vm72 = vcmask 130048
    %v74 = vsel %vm72, %v58, 0
    %76 = vmatprep.subr.bf16.mxu0 0
    %77 = vmatpush1.bf16.msra.mxu0 %v70
    %78 = vmatprep.subr.bf16.mxu0 0
    %79 = vmatpush1.bf16.msra.mxu0 0
    %80 = vmatprep.subr.bf16.mxu0 0
    %81 = vmatpush1.bf16.msra.mxu0 0
    %82 = vmatprep.subr.bf16.mxu0 0
    %83 = vmatpush1.bf16.msra.mxu0 0
    %84 = vmatprep.subr.bf16.mxu0 0
    %85 = vmatpush1.bf16.msra.mxu0 0
    %86 = vmatprep.subr.bf16.mxu0 0
    %87 = vmatpush1.bf16.msra.mxu0 0
    %88 = vmatprep.subr.bf16.mxu0 0
    %89 = vmatpush1.bf16.msra.mxu0 0
    %90 = vmatprep.subr.bf16.mxu0 0
    %91 = vmatpush1.bf16.msra.mxu0 0
    %92 = vmatprep.subr.bf16.mxu0 0
    %93 = vmatpush1.bf16.msra.mxu0 0
    %94 = vmatprep.subr.bf16.mxu0 0
    %95 = vmatpush1.bf16.msra.mxu0 0
    %96 = vmatprep.subr.bf16.mxu0 0
    %97 = vmatpush1.bf16.msra.mxu0 0
    %98 = vmatprep.subr.bf16.mxu0 0
    %99 = vmatpush1.bf16.msra.mxu0 0
    %100 = vmatprep.subr.bf16.mxu0 0
    %101 = vmatpush1.bf16.msra.mxu0 0
    %102 = vmatprep.subr.bf16.mxu0 0
    %103 = vmatpush1.bf16.msra.mxu0 0
    %104 = vmatprep.subr.bf16.mxu0 0
    %105 = vmatpush1.bf16.msra.mxu0 0
    %106 = vmatprep.subr.bf16.mxu0 0
    %107 = vmatpush1.bf16.msra.mxu0 0
    %108 = vmatprep.mubr.bf16.mxu0 0
    %109 = vmatmul.mubr.bf16.gmra.mrb[0].mxu0 %v74
    %v110 = vpop.f32.mrb[0].mxu0
    %v111 = vadd.f32 %v65, %v110
    %v112 = vpop.f32.mrb[0].mxu0
    %v113 = vpop.f32.mrb[0].mxu0
    %v114 = vpop.f32.mrb[0].mxu0
    %115 = vdwg.mxu0
    %v116 = vmax.f32 %v111, 0.0
    %v117 = vpack.c.bf16 %v116, %v116
    %v118 = vld [vmem:[#allocation6] sm:$0xf]
    %v119 = vld [vmem:[#allocation6 + $0x4] sm:$0xf]
    %v120 = vld [vmem:[#allocation6 + $0x8] sm:$0xf]
    %v121 = vld [vmem:[#allocation6 + $0xc] sm:$0xf]
    %v122 = vld [vmem:[#allocation6 + $0x10] sm:$0xf]
    %v123 = vld [vmem:[#allocation6 + $0x14] sm:$0xf]
    %v124 = vld [vmem:[#allocation6 + $0x18] sm:$0xf]
    %v125 = vld [vmem:[#allocation6 + $0x1c] sm:$0xf]
    %v126 = vld [vmem:[#allocation6 + $0x20] sm:$0xf]
    %v127 = vld [vmem:[#allocation6 + $0x24] sm:$0xf]
    %v128 = vld [vmem:[#allocation6 + $0x28] sm:$0xf]
    %v129 = vld [vmem:[#allocation6 + $0x2c] sm:$0xf]
    %v130 = vld [vmem:[#allocation6 + $0x30] sm:$0xf]
    %v131 = vld [vmem:[#allocation6 + $0x34] sm:$0xf]
    %v132 = vld [vmem:[#allocation6 + $0x38] sm:$0xf]
    %v133 = vld [vmem:[#allocation6 + $0x3c] sm:$0xf]
    %v134 = vld [vmem:[%s3 + $0x1] sm:$0x1]
    %v135 = vlaneseq
    %v136 = vshrl.u32 %v135, 7
    %v137 = vsub.s32 0, %v136
    %v138 = vrot.slane %v134, %v137
    %v155 = vunpack.c.l.b16 %v118
    %v156 = vunpack.c.l.b16 %v119
    %v157 = vunpack.c.l.b16 %v120
    %v158 = vunpack.c.l.b16 %v121
    %v159 = vunpack.c.l.b16 %v122
    %v160 = vunpack.c.l.b16 %v123
    %v161 = vunpack.c.l.b16 %v124
    %v162 = vunpack.c.l.b16 %v125
    %v163 = vunpack.c.l.b16 %v126
    %v164 = vunpack.c.l.b16 %v127
    %v165 = vunpack.c.l.b16 %v128
    %v166 = vunpack.c.l.b16 %v129
    %v167 = vunpack.c.l.b16 %v130
    %v168 = vunpack.c.l.b16 %v131
    %v169 = vunpack.c.l.b16 %v132
    %v170 = vunpack.c.l.b16 %v133
    %v171 = vpack.c.b16 %v156, %v155
    %v172 = vpack.c.b16 %v158, %v157
    %v173 = vpack.c.b16 %v160, %v159
    %v174 = vpack.c.b16 %v162, %v161
    %v175 = vpack.c.b16 %v164, %v163
    %v176 = vpack.c.b16 %v166, %v165
    %v177 = vpack.c.b16 %v168, %v167
    %v178 = vpack.c.b16 %v170, %v169
    %187 = vmatprep.subr.bf16.mxu0 0
    %188 = vmatpush1.bf16.msra.mxu0 %v171
    %189 = vmatprep.subr.bf16.mxu0 0
    %190 = vmatpush1.bf16.msra.mxu0 %v172
    %191 = vmatprep.subr.bf16.mxu0 0
    %192 = vmatpush1.bf16.msra.mxu0 %v173
    %193 = vmatprep.subr.bf16.mxu0 0
    %194 = vmatpush1.bf16.msra.mxu0 %v174
    %195 = vmatprep.subr.bf16.mxu0 0
    %196 = vmatpush1.bf16.msra.mxu0 %v175
    %197 = vmatprep.subr.bf16.mxu0 0
    %198 = vmatpush1.bf16.msra.mxu0 %v176
    %199 = vmatprep.subr.bf16.mxu0 0
    %200 = vmatpush1.bf16.msra.mxu0 %v177
    %201 = vmatprep.subr.bf16.mxu0 0
    %202 = vmatpush1.bf16.msra.mxu0 %v178
    %203 = vmatprep.subr.bf16.mxu0 0
    %204 = vmatpush1.bf16.msra.mxu0 0
    %205 = vmatprep.subr.bf16.mxu0 0
    %206 = vmatpush1.bf16.msra.mxu0 0
    %207 = vmatprep.subr.bf16.mxu0 0
    %208 = vmatpush1.bf16.msra.mxu0 0
    %209 = vmatprep.subr.bf16.mxu0 0
    %210 = vmatpush1.bf16.msra.mxu0 0
    %211 = vmatprep.subr.bf16.mxu0 0
    %212 = vmatpush1.bf16.msra.mxu0 0
    %213 = vmatprep.subr.bf16.mxu0 0
    %214 = vmatpush1.bf16.msra.mxu0 0
    %215 = vmatprep.subr.bf16.mxu0 0
    %216 = vmatpush1.bf16.msra.mxu0 0
    %217 = vmatprep.subr.bf16.mxu0 0
    %218 = vmatpush1.bf16.msra.mxu0 0
    %219 = vmatprep.mubr.bf16.mxu0 0
    %220 = vmatmul.mubr.bf16.gmra.mrb[0].mxu0 %v117
    %v221 = vpop.f32.mrb[0].mxu0
    %v222 = vadd.f32 %v138, %v221
    %v223 = vpop.f32.mrb[0].mxu0
    %v224 = vpop.f32.mrb[0].mxu0
    %v225 = vpop.f32.mrb[0].mxu0
    %226 = vdwg.mxu0
    %v227 = vmax.f32 %v222, 0.0
    %v228 = vpack.c.bf16 %v227, %v227
    %s229 = scalar_lea.vmem [#allocation6], 64
    %v230 = vld [vmem:[%s229] sm:$0xf]
    %v231 = vld [vmem:[%s229 + $0x4] sm:$0xf]
    %v232 = vld [vmem:[%s229 + $0x8] sm:$0xf]
    %v233 = vld [vmem:[%s229 + $0xc] sm:$0xf]
    %v234 = vld [vmem:[%s229 + $0x10] sm:$0xf]
    %v235 = vld [vmem:[%s229 + $0x14] sm:$0xf]
    %v236 = vld [vmem:[%s229 + $0x18] sm:$0xf]
    %v237 = vld [vmem:[%s229 + $0x1c] sm:$0xf]
    %v238 = vld [vmem:[%s229 + $0x20] sm:$0xf]
    %v239 = vld [vmem:[%s229 + $0x24] sm:$0xf]
    %v240 = vld [vmem:[%s229 + $0x28] sm:$0xf]
    %v241 = vld [vmem:[%s229 + $0x2c] sm:$0xf]
    %v242 = vld [vmem:[%s229 + $0x30] sm:$0xf]
    %v243 = vld [vmem:[%s229 + $0x34] sm:$0xf]
    %v244 = vld [vmem:[%s229 + $0x38] sm:$0xf]
    %v245 = vld [vmem:[%s229 + $0x3c] sm:$0xf]
    %v246 = vld [vmem:[%s3 + $0x2] sm:$0x1]
    %v247 = vlaneseq
    %v248 = vshrl.u32 %v247, 7
    %v249 = vsub.s32 0, %v248
    %v250 = vrot.slane %v246, %v249
    %v267 = vunpack.c.l.b16 %v230
    %v268 = vunpack.c.l.b16 %v231
    %v269 = vunpack.c.l.b16 %v232
    %v270 = vunpack.c.l.b16 %v233
    %v271 = vunpack.c.l.b16 %v234
    %v272 = vunpack.c.l.b16 %v235
    %v273 = vunpack.c.l.b16 %v236
    %v274 = vunpack.c.l.b16 %v237
    %v275 = vunpack.c.l.b16 %v238
    %v276 = vunpack.c.l.b16 %v239
    %v277 = vunpack.c.l.b16 %v240
    %v278 = vunpack.c.l.b16 %v241
    %v279 = vunpack.c.l.b16 %v242
    %v280 = vunpack.c.l.b16 %v243
    %v281 = vunpack.c.l.b16 %v244
    %v282 = vunpack.c.l.b16 %v245
    %v283 = vpack.c.b16 %v268, %v267
    %v284 = vpack.c.b16 %v270, %v269
    %v285 = vpack.c.b16 %v272, %v271
    %v286 = vpack.c.b16 %v274, %v273
    %v287 = vpack.c.b16 %v276, %v275
    %v288 = vpack.c.b16 %v278, %v277
    %v289 = vpack.c.b16 %v280, %v279
    %v290 = vpack.c.b16 %v282, %v281
    %299 = vmatprep.subr.bf16.mxu0 0
    %300 = vmatpush1.bf16.msra.mxu0 %v283
    %301 = vmatprep.subr.bf16.mxu0 0
    %302 = vmatpush1.bf16.msra.mxu0 %v284
    %303 = vmatprep.subr.bf16.mxu0 0
    %304 = vmatpush1.bf16.msra.mxu0 %v285
    %305 = vmatprep.subr.bf16.mxu0 0
    %306 = vmatpush1.bf16.msra.mxu0 %v286
    %307 = vmatprep.subr.bf16.mxu0 0
    %308 = vmatpush1.bf16.msra.mxu0 %v287
    %309 = vmatprep.subr.bf16.mxu0 0
    %310 = vmatpush1.bf16.msra.mxu0 %v288
    %311 = vmatprep.subr.bf16.mxu0 0
    %312 = vmatpush1.bf16.msra.mxu0 %v289
    %313 = vmatprep.subr.bf16.mxu0 0
    %314 = vmatpush1.bf16.msra.mxu0 %v290
    %315 = vmatprep.subr.bf16.mxu0 0
    %316 = vmatpush1.bf16.msra.mxu0 0
    %317 = vmatprep.subr.bf16.mxu0 0
    %318 = vmatpush1.bf16.msra.mxu0 0
    %319 = vmatprep.subr.bf16.mxu0 0
    %320 = vmatpush1.bf16.msra.mxu0 0
    %321 = vmatprep.subr.bf16.mxu0 0
    %322 = vmatpush1.bf16.msra.mxu0 0
    %323 = vmatprep.subr.bf16.mxu0 0
    %324 = vmatpush1.bf16.msra.mxu0 0
    %325 = vmatprep.subr.bf16.mxu0 0
    %326 = vmatpush1.bf16.msra.mxu0 0
    %327 = vmatprep.subr.bf16.mxu0 0
    %328 = vmatpush1.bf16.msra.mxu0 0
    %329 = vmatprep.subr.bf16.mxu0 0
    %330 = vmatpush1.bf16.msra.mxu0 0
    %331 = vmatprep.mubr.bf16.mxu0 0
    %332 = vmatmul.mubr.bf16.gmra.mrb[0].mxu0 %v228
    %v333 = vpop.f32.mrb[0].mxu0
    %v334 = vadd.f32 %v250, %v333
    %v335 = vpop.f32.mrb[0].mxu0
    %v336 = vpop.f32.mrb[0].mxu0
    %v337 = vpop.f32.mrb[0].mxu0
    %338 = vdwg.mxu0
    %vm339 = vcmask 31744
    %340 = vst.msk [vmem:[%s4] sm:$0xff] %vm339, %v334
    // Predicated region
    $region30: #{tpu_custom_call.1} parent=1 // pred_check
      _
    $region31: #{tpu_custom_call.1} parent=1 // pred_check_branch
      %342 = sbr.rel (0) target = $region33
    $region32: #{tpu_custom_call.1} parent=1 // pred_region
      _
    $region33: #{tpu_custom_call.1} parent=1 // pred_fallthru
      _
    // Predicated region
    $region34: #{tpu_custom_call.1} parent=1 // pred_check
      _
    $region35: #{tpu_custom_call.1} parent=1 // pred_check_branch
      %344 = sbr.rel (0) target = $region37
    $region36: #{tpu_custom_call.1} parent=1 // pred_region
      _
    $region37: #{tpu_custom_call.1} parent=1 // pred_fallthru
      _
    %345 = vsyncpa [#allocation3], 1
    %346 = vsyncpa [#allocation5], 1

</llo_original>
